<compile_context>
chip_gen: v7x
topology: tpu7x:2x2x1
jax: 0.10.0
libtpu: 0.0.40
codegen_flags: <defaults>
</compile_context>

<pallas_src>
import functools

import jax
import jax.numpy as jnp
from jax import lax
from jax.experimental import pallas as pl
from jax.experimental.pallas import tpu as pltpu


def _round_up(x, m):
    return (x + m - 1) // m * m


def _pad_axis(a, target, axis):
    pad = target - a.shape[axis]
    if pad <= 0:
        return a
    widths = [(0, 0)] * a.ndim
    widths[axis] = (0, pad)
    return jnp.pad(a, widths)


# ------------------------- projection (x @ W [+ b]) ------------------------ #
# Full-K contraction per tile: no k grid axis, no accumulator scratch.  The
# weight block index depends only on the N tile and the N tile is the OUTER
# grid axis, so each weight tile is read from HBM once (not once per M tile).

def _proj_kernel(x_ref, w_ref, o_ref):
    o_ref[...] = jnp.dot(x_ref[...], w_ref[...],
                         preferred_element_type=jnp.float32).astype(o_ref.dtype)


def _proj_bias_kernel(x_ref, w_ref, b_ref, o_ref):
    acc = jnp.dot(x_ref[...], w_ref[...], preferred_element_type=jnp.float32)
    o_ref[...] = (acc + b_ref[...].astype(jnp.float32)).astype(o_ref.dtype)


_W_BUDGET = 12 << 20      # double-buffered weight-tile budget (bytes)
_TOTAL_BUDGET = 28 << 20  # per-call VMEM working-set target (safe on v7x too)


def _projection(x2d, w, bias=None, *, out_dtype):
    """out = x2d @ w (+ bias).  x2d: (M, K), w: (K, N), bias: (N,) or None."""
    M, K = x2d.shape
    K2, N = w.shape
    assert K == K2
    ib = jnp.dtype(x2d.dtype).itemsize
    wb = jnp.dtype(w.dtype).itemsize
    ob = jnp.dtype(out_dtype).itemsize

    # N tile: keep the whole weight VMEM-resident when it fits, else 128-multiples.
    if 2 * K * N * wb <= _W_BUDGET:
        tn = N
    else:
        tn = max(128, (_W_BUDGET // (2 * K * wb)) // 128 * 128)
    Np = _round_up(N, tn)

    # M tile: biggest that fits the remaining budget, avoiding large pad waste.
    rem = max(_TOTAL_BUDGET - 2 * K * tn * wb, 2 * 8 * (K * ib + tn * ob))
    tm = 8
    for cand in (1024, 512, 256, 128, 64, 32, 16, 8):
        if 2 * cand * (K * ib + tn * ob) <= rem:
            tm = cand
            break
    tm = min(tm, _round_up(M, 8))
    while tm > 128 and (_round_up(M, tm) - M) * 4 > M:   # >25% pad waste
        tm //= 2
    Mp = _round_up(M, tm)

    xp = _pad_axis(x2d, Mp, 0)
    wp = _pad_axis(w, Np, 1)

    grid = (Np // tn, Mp // tm)   # weight tile on the outer axis => loaded once
    in_specs = [
        pl.BlockSpec((tm, K), lambda j, i: (i, 0)),
        pl.BlockSpec((K, tn), lambda j, i: (0, j)),
    ]
    operands = [xp, wp]
    kernel = _proj_kernel
    if bias is not None:
        in_specs.append(pl.BlockSpec((1, tn), lambda j, i: (0, j)))
        operands.append(_pad_axis(bias.reshape(1, N).astype(jnp.float32), Np, 1))
        kernel = _proj_bias_kernel

    foot = (2 * tm * K * ib + 2 * K * tn * wb + 2 * tm * tn * ob
            + (2 * tn * 4 if bias is not None else 0))
    vmem_limit = int(min(max(foot + (4 << 20), 32 << 20), 64 << 20))

    out = pl.pallas_call(
        kernel,
        out_shape=jax.ShapeDtypeStruct((Mp, Np), out_dtype),
        grid=grid,
        in_specs=in_specs,
        out_specs=pl.BlockSpec((tm, tn), lambda j, i: (i, j)),
        compiler_params=pltpu.CompilerParams(
            dimension_semantics=("parallel", "parallel"),
            vmem_limit_bytes=vmem_limit),
    )(*operands)
    return out[:M, :N]


# ------------------ fused attention + output projection -------------------- #

def _attn_out_kernel(qkv_ref, wo_ref, bo_ref, o_ref, acc_ref, *,
                     num_heads, dim_per_head, heads_per_group):
    """Per-batch multi-head attention fused with the output projection.

    qkv_ref: (1, L, 3*inner)  -- q columns are pre-scaled by dim_per_head**-0.5
    wo_ref : (inner, D)       -- VMEM-resident across the whole grid
    bo_ref : (1, D)  f32 bias
    o_ref  : (1, L, D)
    acc_ref: (L, D)  f32 VMEM scratch (output-projection accumulator)
    """
    inner = num_heads * dim_per_head
    gw = heads_per_group * dim_per_head
    n_groups = num_heads // heads_per_group

    for g in range(n_groups):
        goff = g * gw
        # Lane-dense group-wide loads (128-wide, 128-aligned for Dh=64 pairs)
        q_g = qkv_ref[0, :, goff:goff + gw]
        k_g = qkv_ref[0, :, inner + goff:inner + goff + gw]
        v_g = qkv_ref[0, :, 2 * inner + goff:2 * inner + goff + gw]
        zs = []
        for h in range(heads_per_group):
            sl = slice(h * dim_per_head, (h + 1) * dim_per_head)
            # q @ k^T via dot_general contracting last dims (no explicit transpose)
            s = lax.dot_general(q_g[:, sl], k_g[:, sl],
                                (((1,), (1,)), ((), ())),
                                preferred_element_type=jnp.float32)
            m = jnp.max(s, axis=-1, keepdims=True)
            p = jnp.exp(s - m)                                   # f32 softmax
            denom = jnp.sum(p, axis=-1, keepdims=True)
            p = p * pl.reciprocal(denom, approx=True)            # EUP, frees VALU
            z = jnp.dot(p.astype(v_g.dtype), v_g[:, sl],
                        preferred_element_type=jnp.float32)
            zs.append(z.astype(wo_ref.dtype))
        z_g = zs[0] if heads_per_group == 1 else jnp.concatenate(zs, axis=-1)
        # Stream this head group straight into the output projection:
        # (L, gw) @ (gw, D) accumulated in f32 VMEM.  Live vregs stay capped at
        # one head group; all VMEM stores are D-wide lane-dense (no vst.msk),
        # and z never round-trips HBM.
        zw = jnp.dot(z_g, wo_ref[goff:goff + gw, :],
                     preferred_element_type=jnp.float32)
        if g == 0:
            acc_ref[...] = zw
        else:
            acc_ref[...] += zw

    o_ref[0] = (acc_ref[...] + bo_ref[...]).astype(o_ref.dtype)
    # TODO(synk): for long sequences (L^2 f32 scores no longer fit VMEM,
    # especially v7x's 64 MiB) switch to a flash-style online softmax over a
    # kv grid axis; not needed at ViT-scale L.


# --------------------------------- wrapper --------------------------------- #

def self_attention_forward(x, w_qkv, w_out, b_out, *, num_heads, dim_per_head,
                           compute_dtype=jnp.bfloat16):
    """Pallas forward pass equivalent to SelfAttention.forward (dropout=0).

    compute_dtype sets the MXU input precision of the projections / attention
    matmuls (bf16 default: the MXU is bf16-native on v5e/v6e/v7x); all
    accumulation and the whole softmax stay in f32 on every path.
    """
    b, l, d = x.shape
    inner = num_heads * dim_per_head
    out_dtype = x.dtype
    compute_dtype = jnp.dtype(compute_dtype or x.dtype)

    # project_out=False (nn.Identity) <=> num_heads==1 and dim_per_head==dim:
    # lowered as an exact identity projection so the fused kernel is reused.
    if w_out is None:
        w_out = jnp.eye(inner, dtype=jnp.float32)
        b_out = jnp.zeros((inner,), dtype=jnp.float32)
    d_out = w_out.shape[1]

    # Fold the softmax scale into the q columns of w_qkv once, in f32.
    scale = dim_per_head ** (-0.5)
    wq = w_qkv.astype(jnp.float32).at[:, :inner].multiply(scale)
    wq = wq.astype(compute_dtype)
    wo = w_out.astype(compute_dtype)
    bo = b_out.astype(jnp.float32).reshape(1, d_out)
    xc = x.astype(compute_dtype)

    # i. QKV projection (no bias): (B*L, D) @ (D, 3*inner)
    qkv = _projection(xc.reshape(b * l, d), wq, out_dtype=compute_dtype)
    qkv = qkv.reshape(b, l, 3 * inner)

    # ii-iv. attention + output projection fused per batch element.
    hpg = max(1, min(num_heads, 128 // max(dim_per_head, 1)))
    while num_heads % hpg:
        hpg -= 1
    gw = hpg * dim_per_head

    cb = compute_dtype.itemsize
    ob = jnp.dtype(out_dtype).itemsize
    attn_foot = (2 * l * 3 * inner * cb     # qkv blocks (double-buffered)
                 + 2 * inner * d_out * cb   # resident w_out
                 + 2 * l * d_out * ob       # output blocks
                 + l * d_out * 4            # f32 accumulator scratch
                 + 2 * l * l * 4            # per-head score / prob working set
                 + 2 * l * max(gw, 128) * 4)
    attn_vmem = int(min(max(attn_foot + (4 << 20), 32 << 20), 64 << 20))

    out = pl.pallas_call(
        functools.partial(_attn_out_kernel, num_heads=num_heads,
                          dim_per_head=dim_per_head, heads_per_group=hpg),
        out_shape=jax.ShapeDtypeStruct((b, l, d_out), out_dtype),
        grid=(b,),
        in_specs=[
            pl.BlockSpec((1, l, 3 * inner), lambda bi: (bi, 0, 0)),
            pl.BlockSpec((inner, d_out), lambda bi: (0, 0)),   # weight resident
            pl.BlockSpec((1, d_out), lambda bi: (0, 0)),       # bias resident
        ],
        out_specs=pl.BlockSpec((1, l, d_out), lambda bi: (bi, 0, 0)),
        scratch_shapes=[pltpu.VMEM((l, d_out), jnp.float32)],
        compiler_params=pltpu.CompilerParams(
            dimension_semantics=("parallel",),
            vmem_limit_bytes=attn_vmem),
    )(qkv, wo, bo)
    # TODO(synk): nn.Dropout(p=0.0) is an identity in the forward pass; not lowered.
    # TODO(synk): on v7x with B==1 the fused (B,)-grid leaves one TensorCore
    # idle; an unfused variant with a 'parallel' head-group grid axis would
    # trade the saved z HBM round trip for that parallelism.
    return out


# --------------------------- reference (pure JAX) -------------------------- #

def _reference(x, w_qkv, w_out, b_out, *, num_heads, dim_per_head):
    b, l, d = x.shape
    inner = num_heads * dim_per_head
    scale = dim_per_head ** (-0.5)
    qkv = x.reshape(b * l, d) @ w_qkv
    qkv = qkv.reshape(b, l, 3, num_heads, dim_per_head).transpose(2, 0, 3, 1, 4)
    q, k, v = qkv[0], qkv[1], qkv[2]
    s = jnp.einsum("bhqd,bhkd->bhqk", q, k) * scale
    p = jax.nn.softmax(s, axis=-1)
    z = jnp.einsum("bhqk,bhkd->bhqd", p, v)
    z = z.transpose(0, 2, 1, 3).reshape(b * l, inner)
    return (z @ w_out + b_out).reshape(b, l, d)


# ----------------------------------- main ----------------------------------- #

if __name__ == "__main__":
    # small, MAE-ViT-flavored shapes
    B, L, DIM = 2, 16, 32
    NUM_HEADS, DIM_PER_HEAD = 2, 16          # inner_dim = 32, project_out = True
    INNER = NUM_HEADS * DIM_PER_HEAD

    key = jax.random.PRNGKey(0)
    kx, kqkv, kw, kb = jax.random.split(key, 4)

    x = jax.random.normal(kx, (B, L, DIM), dtype=jnp.float32)
    # deterministic synthetic parameters (nn.Linear shapes, stored as (in, out))
    w_qkv = jax.random.normal(kqkv, (DIM, 3 * INNER), dtype=jnp.float32) * 0.05
    w_out = jax.random.normal(kw, (INNER, DIM), dtype=jnp.float32) * 0.05
    b_out = jax.random.normal(kb, (DIM,), dtype=jnp.float32) * 0.05

    ref = _reference(x, w_qkv, w_out, b_out,
                     num_heads=NUM_HEADS, dim_per_head=DIM_PER_HEAD)

    # f32 compute path (tight check; approx reciprocal error << tolerance)
    out_f32 = self_attention_forward(x, w_qkv, w_out, b_out,
                                     num_heads=NUM_HEADS,
                                     dim_per_head=DIM_PER_HEAD,
                                     compute_dtype=jnp.float32)
    out_f32 = jax.block_until_ready(out_f32)
    assert out_f32.shape == (B, L, DIM)
    assert jnp.allclose(out_f32, ref, atol=2e-3, rtol=2e-3), "f32 mismatch vs reference"

    # default bf16 MXU path (f32 accumulation + f32 softmax; loose check)
    out_bf16 = self_attention_forward(x, w_qkv, w_out, b_out,
                                      num_heads=NUM_HEADS,
                                      dim_per_head=DIM_PER_HEAD)
    out_bf16 = jax.block_until_ready(out_bf16)
    assert jnp.allclose(out_bf16.astype(jnp.float32), ref,
                        atol=5e-2, rtol=5e-2), "bf16 mismatch vs reference"

    print("KERNEL_OK")
</pallas_src>

<mosaic_0001>
module attributes {stable_mosaic.version = 11 : i64} {
  func.func @_proj_kernel(%arg0: i32, %arg1: i32, %arg2: memref<32x32xf32, #tpu.memory_space<vmem>>, %arg3: memref<32x96xf32, #tpu.memory_space<vmem>>, %arg4: memref<32x96xf32, #tpu.memory_space<vmem>>) attributes {dimension_semantics = [#tpu.dimension_semantics<parallel>, #tpu.dimension_semantics<parallel>], iteration_bounds = array<i64: 1, 1>, scalar_prefetch = 0 : i64, scratch_operands = 0 : i64, tpu.core_type = #tpu.core_type<tc>, window_params = [{transform_indices = @transform_0, window_bounds = array<i64: 32, 32>}, {transform_indices = @transform_1, window_bounds = array<i64: 32, 96>}, {transform_indices = @transform_2, window_bounds = array<i64: 32, 96>}]} {
    %c0 = arith.constant 0 : index
    %c0_0 = arith.constant 0 : index
    %0 = vector.load %arg2[%c0, %c0_0] : memref<32x32xf32, #tpu.memory_space<vmem>>, vector<32x32xf32>
    %c0_1 = arith.constant 0 : index
    %c0_2 = arith.constant 0 : index
    %1 = vector.load %arg3[%c0_1, %c0_2] : memref<32x96xf32, #tpu.memory_space<vmem>>, vector<32x96xf32>
    %cst = arith.constant dense<0.000000e+00> : vector<32x96xf32>
    %2 = tpu.matmul %0, %1, %cst {dimension_numbers = #tpu.dot_dimension_numbers<[1], [0], [0], [1], [0, 0, 1, 1], [], []>} : vector<32x32xf32>, vector<32x96xf32>, vector<32x96xf32> -> vector<32x96xf32>
    %c0_3 = arith.constant 0 : index
    %c0_4 = arith.constant 0 : index
    %3 = vector.load %arg4[%c0_3, %c0_4] : memref<32x96xf32, #tpu.memory_space<vmem>>, vector<32x96xf32>
    tpu.vector_store %arg4[%c0_3, %c0_4], %2 {strides = array<i32>} : memref<32x96xf32, #tpu.memory_space<vmem>>, vector<32x96xf32>,
    return
  }
  func.func @transform_0(%arg0: i32, %arg1: i32) -> (i32, i32) {
    %c0_i32 = arith.constant 0 : i32
    %c0_i32_0 = arith.constant 0 : i32
    return %arg1, %c0_i32 : i32, i32
  }
  func.func @transform_1(%arg0: i32, %arg1: i32) -> (i32, i32) {
    %c0_i32 = arith.constant 0 : i32
    %c0_i32_0 = arith.constant 0 : i32
    return %c0_i32, %arg0 : i32, i32
  }
  func.func @transform_2(%arg0: i32, %arg1: i32) -> (i32, i32) {
    %c0_i32 = arith.constant 0 : i32
    return %arg1, %arg0 : i32, i32
  }
}

</mosaic_0001>

<llo_original>
// kernel: tpu_custom_call.1
$region0: #{tpu_custom_call.1}
  #allocation0 [shape = 'u32[]', space=smem, size = 0x4, offset = 0x4, fixed_abs, tag = 'smem constant byte address 0x4 - core index']
  #allocation1 [shape = 'u32[144,128]{1,0:T(1,128)}', space=vmem, size = 0x12000, scoped, tag = 'internal scratch']
  %s0 = inlined_call_operand.hbm [shape: f32[32,32], index: 0, kind: input, shape index: {}]
  %s1 = inlined_call_operand.hbm [shape: f32[32,96], index: 1, kind: input, shape index: {}]
  %s2 = inlined_call_operand.hbm [shape: f32[32,96], index: 2, kind: output, shape index: {}]
  %s3 = sld [smem:[#allocation0]]
  $region26: #{tpu_custom_call.1} parent=0
    _
  %s5 = ssub.s32 1, %s3
  %s6 = scalar_select 0, %s5, %s3
  $region1: #{tpu_custom_call.1} parent=0
    #allocation2 [shape = 'u8[16384]{0}', space=vmem, size = 0x4000, scoped, tag = 'input window, operand 0, single buffered']
    #allocation3 [shape = 's32[1]{0}', space=sflag, size = 0x4, scoped, tag = 'scoped memory for tpu_custom_call.1']
    #allocation4 [shape = 's32[1]{0}', space=sflag, size = 0x4, scoped, tag = 'scoped memory for tpu_custom_call.1']
    #allocation5 [shape = 'u8[16384]{0}', space=vmem, size = 0x4000, scoped, tag = 'input window, operand 1, single buffered']
    #allocation6 [shape = 's32[1]{0}', space=sflag, size = 0x4, scoped, tag = 'scoped memory for tpu_custom_call.1']
    #allocation7 [shape = 'u8[16384]{0}', space=vmem, size = 0x4000, scoped, tag = 'output window, operand 0, single buffered']
    %7 = vsyncpa [#allocation3], 0
    %8 = vsyncpa [#allocation6], 0
    %9 = vsyncpa [#allocation4], 0
    // Predicated region
    $region2: #{tpu_custom_call.1} parent=1 // pred_check
      _
    $region3: #{tpu_custom_call.1} parent=1 // pred_check_branch
      %11 = sbr.rel (0) target = $region5
    $region4: #{tpu_custom_call.1} parent=1 // pred_region
      %s13 = ssub.s32 512, 512
      %14 = vsyncadd [#allocation3], %s13
      %s15 = sshll.u32 [#allocation2], 4
      %s16 = int_to_ptr.vmem [resolvable:$true] %s15
      %21 = dma.hbm_to_vmem [thread:$0]  %s0, 512, %s16, [#allocation3], 128, 128, 8
    $region5: #{tpu_custom_call.1} parent=1 // pred_fallthru
      _
    // Predicated region
    $region6: #{tpu_custom_call.1} parent=1 // pred_check
      _
    $region7: #{tpu_custom_call.1} parent=1 // pred_check_branch
      %23 = sbr.rel (0) target = $region9
    $region8: #{tpu_custom_call.1} parent=1 // pred_region
      %s25 = ssub.s32 512, 512
      %26 = vsyncadd [#allocation6], %s25
      %s27 = sshll.u32 [#allocation5], 4
      %s28 = int_to_ptr.vmem [resolvable:$true] %s27
      %33 = dma.hbm_to_vmem [thread:$0]  %s1, 512, %s28, [#allocation6], 128, 128, 8
    $region9: #{tpu_custom_call.1} parent=1 // pred_fallthru
      _
    // Predicated region
    $region10: #{tpu_custom_call.1} parent=1 // pred_check
      _
    $region11: #{tpu_custom_call.1} parent=1 // pred_check_branch
      %35 = sbr.rel (0) target = $region13
    $region12: #{tpu_custom_call.1} parent=1 // pred_region
      %36 = dma.done [#allocation3], 512
    $region13: #{tpu_custom_call.1} parent=1 // pred_fallthru
      _
    // Predicated region
    $region14: #{tpu_custom_call.1} parent=1 // pred_check
      _
    $region15: #{tpu_custom_call.1} parent=1 // pred_check_branch
      %38 = sbr.rel (0) target = $region17
    $region16: #{tpu_custom_call.1} parent=1 // pred_region
      %39 = dma.done [#allocation6], 512
    $region17: #{tpu_custom_call.1} parent=1 // pred_fallthru
      _
    %v40 = vld [vmem:[#allocation2] sm:$0xff]
    %v41 = vld [vmem:[#allocation2 + $0x8] sm:$0xff]
    %v42 = vld [vmem:[#allocation2 + $0x10] sm:$0xff]
    %v43 = vld [vmem:[#allocation2 + $0x18] sm:$0xff]
    %v44 = vld [vmem:[#allocation5] sm:$0xff]
    %v45 = vld [vmem:[#allocation5 + $0x8] sm:$0xff]
    %v46 = vld [vmem:[#allocation5 + $0x10] sm:$0xff]
    %v47 = vld [vmem:[#allocation5 + $0x18] sm:$0xff]
    %vm48 = vcmask 261120
    %v50 = vsel %vm48, %v40, 0
    %v53 = vsel %vm48, %v41, 0
    %v56 = vsel %vm48, %v42, 0
    %v59 = vsel %vm48, %v43, 0
    %61 = vmatprep.subr.mxu0 0.0
    %62 = vmatpush1.msra.mxu0 %v44
    %63 = vmatprep.subr.mxu0 0.0
    %64 = vmatpush1.msra.mxu0 %v45
    %65 = vmatprep.subr.mxu0 0.0
    %66 = vmatpush1.msra.mxu0 %v46
    %67 = vmatprep.subr.mxu0 0.0
    %68 = vmatpush1.msra.mxu0 %v47
    %69 = vmatprep.subr.mxu0 0.0
    %70 = vmatpush1.msra.mxu0 0.0
    %71 = vmatprep.subr.mxu0 0.0
    %72 = vmatpush1.msra.mxu0 0.0
    %73 = vmatprep.subr.mxu0 0.0
    %74 = vmatpush1.msra.mxu0 0.0
    %75 = vmatprep.subr.mxu0 0.0
    %76 = vmatpush1.msra.mxu0 0.0
    %77 = vmatprep.subr.mxu0 0.0
    %78 = vmatpush1.msra.mxu0 0.0
    %79 = vmatprep.subr.mxu0 0.0
    %80 = vmatpush1.msra.mxu0 0.0
    %81 = vmatprep.subr.mxu0 0.0
    %82 = vmatpush1.msra.mxu0 0.0
    %83 = vmatprep.subr.mxu0 0.0
    %84 = vmatpush1.msra.mxu0 0.0
    %85 = vmatprep.subr.mxu0 0.0
    %86 = vmatpush1.msra.mxu0 0.0
    %87 = vmatprep.subr.mxu0 0.0
    %88 = vmatpush1.msra.mxu0 0.0
    %89 = vmatprep.subr.mxu0 0.0
    %90 = vmatpush1.msra.mxu0 0.0
    %91 = vmatprep.subr.mxu0 0.0
    %92 = vmatpush1.msra.mxu0 0.0
    %93 = vmatprep.subr.mxu0 0.0
    %94 = vmatpush1.msra.mxu0 0.0
    %95 = vmatprep.subr.mxu0 0.0
    %96 = vmatpush1.msra.mxu0 0.0
    %97 = vmatprep.subr.mxu0 0.0
    %98 = vmatpush1.msra.mxu0 0.0
    %99 = vmatprep.subr.mxu0 0.0
    %100 = vmatpush1.msra.mxu0 0.0
    %101 = vmatprep.subr.mxu0 0.0
    %102 = vmatpush1.msra.mxu0 0.0
    %103 = vmatprep.subr.mxu0 0.0
    %104 = vmatpush1.msra.mxu0 0.0
    %105 = vmatprep.subr.mxu0 0.0
    %106 = vmatpush1.msra.mxu0 0.0
    %107 = vmatprep.subr.mxu0 0.0
    %108 = vmatpush1.msra.mxu0 0.0
    %109 = vmatprep.subr.mxu0 0.0
    %110 = vmatpush1.msra.mxu0 0.0
    %111 = vmatprep.subr.mxu0 0.0
    %112 = vmatpush1.msra.mxu0 0.0
    %113 = vmatprep.subr.mxu0 0.0
    %114 = vmatpush1.msra.mxu0 0.0
    %115 = vmatprep.subr.mxu0 0.0
    %116 = vmatpush1.msra.mxu0 0.0
    %117 = vmatprep.subr.mxu0 0.0
    %118 = vmatpush1.msra.mxu0 0.0
    %119 = vmatprep.subr.mxu0 0.0
    %120 = vmatpush1.msra.mxu0 0.0
    %121 = vmatprep.subr.mxu0 0.0
    %122 = vmatpush1.msra.mxu0 0.0
    %123 = vmatprep.subr.mxu0 0.0
    %124 = vmatpush1.msra.mxu0 0.0
    %125 = vmatprep.mubr.f32.mxu0 0.0
    %126 = vmatmul.mubr.f32.gmra.mrb[0].mxu0 %v50
    %v127 = vpop.f32.mrb[0].mxu0
    %v128 = vadd.f32 0.0, %v127
    %v129 = vpop.f32.mrb[0].mxu0
    %130 = vmatprep.mubr.f32.mxu0 0.0
    %131 = vmatmul.mubr.f32.gmra.mrb[0].mxu0 %v53
    %v132 = vpop.f32.mrb[0].mxu0
    %v133 = vadd.f32 0.0, %v132
    %v134 = vpop.f32.mrb[0].mxu0
    %135 = vmatprep.mubr.f32.mxu0 0.0
    %136 = vmatmul.mubr.f32.gmra.mrb[0].mxu0 %v56
    %v137 = vpop.f32.mrb[0].mxu0
    %v138 = vadd.f32 0.0, %v137
    %v139 = vpop.f32.mrb[0].mxu0
    %140 = vmatprep.mubr.f32.mxu0 0.0
    %141 = vmatmul.mubr.f32.gmra.mrb[0].mxu0 %v59
    %v142 = vpop.f32.mrb[0].mxu0
    %v143 = vadd.f32 0.0, %v142
    %v144 = vpop.f32.mrb[0].mxu0
    %145 = vdwg.mxu0
    %vm146 = vcmask 785408
    %147 = vst.msk [vmem:[#allocation7] sm:$0xff] %vm146, %v128
    %148 = vst.msk [vmem:[#allocation7 + $0x8] sm:$0xff] %vm146, %v133
    %149 = vst.msk [vmem:[#allocation7 + $0x10] sm:$0xff] %vm146, %v138
    %150 = vst.msk [vmem:[#allocation7 + $0x18] sm:$0xff] %vm146, %v143
    // Predicated region
    $region18: #{tpu_custom_call.1} parent=1 // pred_check
      _
    $region19: #{tpu_custom_call.1} parent=1 // pred_check_branch
      %152 = sbr.rel (0) target = $region21
    $region20: #{tpu_custom_call.1} parent=1 // pred_region
      %s154 = ssub.s32 512, 512
      %155 = vsyncadd [#allocation4], %s154
      %s156 = sshll.u32 [#allocation7], 4
      %s157 = int_to_ptr.vmem [resolvable:$true] %s156
      %162 = dma.vmem_to_hbm [thread:$0]  %s157, 512, %s2, [#allocation4], 128, 128, 8
    $region21: #{tpu_custom_call.1} parent=1 // pred_fallthru
      _
    // Predicated region
    $region22: #{tpu_custom_call.1} parent=1 // pred_check
      _
    $region23: #{tpu_custom_call.1} parent=1 // pred_check_branch
      %164 = sbr.rel (0) target = $region25
    $region24: #{tpu_custom_call.1} parent=1 // pred_region
      %165 = dma.done [#allocation4], 512
    $region25: #{tpu_custom_call.1} parent=1 // pred_fallthru
      _
    %166 = vsyncpa [#allocation3], 1
    %167 = vsyncpa [#allocation6], 1
    %168 = vsyncpa [#allocation4], 1

</llo_original>
